<compile_context>
chip_gen: v7x
topology: tpu7x:2x2x1
jax: 0.10.0
libtpu: 0.0.40
codegen_flags: <defaults>
</compile_context>

<pallas_src>
import math

import jax
import jax.numpy as jnp
from jax.experimental import pallas as pl
from jax.experimental.pallas import tpu as pltpu


def _round_up(x, m):
    return ((x + m - 1) // m) * m


def embed_kernel(x_ref, xm_ref, w0_ref, w1_ref, w2_ref, wl_ref, o_ref):
    # x_ref  : (tb, L, c_in)   raw values (no im2col; conv taps formed in-register)
    # xm_ref : (tb, L, d_inp)  time features
    # w*_ref : conv taps (c_in, d_model) for k=0,1,2 and temporal linear (d_inp, d_model)
    # o_ref  : (tb*L, d_model) flattened rows (lane-dense whenever d_model >= 128)
    tb, L, c_in = x_ref.shape
    rows = tb * L

    # Upcast to f32 before the sublane roll/reshape (32-bit sublane rotate is the
    # best-supported path; kernel is HBM-bound so the extra VPU casts are free).
    x = x_ref[...].astype(jnp.float32)
    # circular padding of the k=3 conv: out[t] = W0 x[t-1] + W1 x[t] + W2 x[t+1] (mod L)
    x_prev = pltpu.roll(x, shift=1, axis=1)        # x_prev[:, t] = x[:, (t-1) % L]
    x_next = pltpu.roll(x, shift=L - 1, axis=1)    # x_next[:, t] = x[:, (t+1) % L]

    # Zero-cost reshapes when L % 8 == 0 (sublane tiling); merges (tb, L) -> rows.
    r_mid = x.reshape(rows, c_in)
    r_prev = x_prev.reshape(rows, c_in)
    r_next = x_next.reshape(rows, c_in)
    r_mark = xm_ref[...].astype(jnp.float32).reshape(rows, xm_ref.shape[-1])

    acc = jnp.dot(r_mid, w1_ref[...], preferred_element_type=jnp.float32)
    acc += jnp.dot(r_prev, w0_ref[...], preferred_element_type=jnp.float32)
    acc += jnp.dot(r_next, w2_ref[...], preferred_element_type=jnp.float32)
    acc += jnp.dot(r_mark, wl_ref[...], preferred_element_type=jnp.float32)
    o_ref[...] = acc.astype(o_ref.dtype)


def data_embedding_wo_pos(x, x_mark, w_conv, w_lin, *, compute_dtype=None,
                          rows_per_tile=2048):
    """Forward pass of DataEmbedding_wo_pos (eval mode).

    x      : (..., L, c_in)
    x_mark : (B0, L, d_inp)   (B0 may divide prod(leading dims of x); then it is
                               broadcast like the PyTorch reshape/unsqueeze branch)
    w_conv : (d_model, c_in, 3)  PyTorch Conv1d weight layout (OIH)
    w_lin  : (d_model, d_inp)    PyTorch Linear weight layout
    compute_dtype : optional (e.g. jnp.bfloat16) for the activation HBM streams and
                    the output; accumulation stays f32 in the kernel.  For production
                    pass jnp.bfloat16 (halves the dominant HBM traffic).
    """
    *lead, L, c_in = x.shape
    d_model, c_in_w, kw = w_conv.shape
    assert c_in_w == c_in and kw == 3, (w_conv.shape, c_in)
    d_inp = w_lin.shape[1]

    xf = x.reshape(-1, L, c_in)
    Bf = xf.shape[0]
    xm = x_mark.reshape(-1, L, d_inp)
    B0 = xm.shape[0]
    if B0 != Bf:
        # PyTorch branch: a.reshape(len(b), -1, L, d) + b.unsqueeze(1) then flatten(0,1)
        # -> x block i uses x_mark[i // (Bf // B0)].  broadcast_to avoids a repeat copy.
        assert Bf % B0 == 0, f"x batch {Bf} not a multiple of x_mark batch {B0}"
        n = Bf // B0
        xm = jnp.broadcast_to(xm[:, None], (B0, n, L, d_inp)).reshape(Bf, L, d_inp)

    in_dtype = jnp.dtype(x.dtype if compute_dtype is None else compute_dtype)
    out_dtype = in_dtype
    xf = xf.astype(in_dtype)
    xm = xm.astype(in_dtype)

    # Fold the NCL<->NLC permutes into the (tiny) weights; keep them f32 and resident.
    w0 = jnp.asarray(w_conv[:, :, 0].T, jnp.float32)   # (c_in, d_model)
    w1 = jnp.asarray(w_conv[:, :, 1].T, jnp.float32)
    w2 = jnp.asarray(w_conv[:, :, 2].T, jnp.float32)
    wl = jnp.asarray(w_lin.T, jnp.float32)             # (d_inp, d_model)

    # ---- batch-tile selection (whole sequences per tile so the circular roll stays
    # inside VMEM; ragged last tile handled by Pallas, no pad/slice passes) ----
    tb = max(1, min(Bf, rows_per_tile // max(L, 1)))
    n_tiles = -(-Bf // tb)
    # v7x has 2 TensorCores; a "parallel" grid needs >= 2 tiles to use both.
    if Bf >= 2 and n_tiles < 2:
        tb = -(-Bf // 2)
    # Output block rows (tb*L) must be a multiple of 8 unless it is the full extent.
    while tb < Bf and (tb * L) % 8 != 0:
        tb += 1
    if (tb * L) % 8 != 0:
        tb = Bf
    n_tiles = -(-Bf // tb)

    rows_total = Bf * L
    rows_block = tb * L

    # ---- explicit VMEM budget (defaults differ across v5e/v6e/v7x) ----
    lane = 128
    in_it = in_dtype.itemsize
    out_it = jnp.dtype(out_dtype).itemsize
    est = (2 * tb * _round_up(L, 8) * (_round_up(c_in, lane) + _round_up(d_inp, lane)) * in_it
           + 2 * _round_up(rows_block, 8) * _round_up(d_model, lane) * out_it
           + 8 * (3 * _round_up(c_in, 8) + _round_up(d_inp, 8)) * _round_up(d_model, lane)
           + 5 * tb * _round_up(L, 8) * lane * 4
           + 2 * _round_up(rows_block, 8) * _round_up(d_model, lane) * 4)
    vmem_limit = int(min(48 * 2 ** 20, max(16 * 2 ** 20, 2 * est)))

    cost = pl.CostEstimate(
        flops=2 * rows_total * (3 * c_in + d_inp) * d_model,
        transcendentals=0,
        bytes_accessed=(rows_total * (c_in + d_inp) * in_it
                        + rows_total * d_model * out_it
                        + (3 * c_in + d_inp) * d_model * 4),
    )

    out = pl.pallas_call(
        embed_kernel,
        out_shape=jax.ShapeDtypeStruct((rows_total, d_model), out_dtype),
        grid=(n_tiles,),
        in_specs=[
            pl.BlockSpec((tb, L, c_in), lambda i: (i, 0, 0)),
            pl.BlockSpec((tb, L, d_inp), lambda i: (i, 0, 0)),
            # Weight blocks are constant across the grid (index_map (0,0) -> DMA'd once).
            pl.BlockSpec((c_in, d_model), lambda i: (0, 0)),
            pl.BlockSpec((c_in, d_model), lambda i: (0, 0)),
            pl.BlockSpec((c_in, d_model), lambda i: (0, 0)),
            pl.BlockSpec((d_inp, d_model), lambda i: (0, 0)),
        ],
        out_specs=pl.BlockSpec((rows_block, d_model), lambda i: (i, 0)),
        compiler_params=pltpu.CompilerParams(
            dimension_semantics=("parallel",),
            vmem_limit_bytes=vmem_limit),
        cost_estimate=cost,
    )(xf, xm, w0, w1, w2, wl)

    out = out.reshape((*lead, L, d_model))
    # TODO(synk): nn.Dropout(p=0.1) is identity in eval mode; training-mode RNG dropout
    # is not implemented here.
    return out


# ----------------------------- pure-JAX reference -----------------------------
def _circular_conv_ref(x, w_conv):
    x_ncl = jnp.transpose(x, (0, 2, 1))                     # (B, C, L)
    x_pad = jnp.pad(x_ncl, ((0, 0), (0, 0), (1, 1)), mode="wrap")
    y = jax.lax.conv_general_dilated(
        x_pad, w_conv, window_strides=(1,), padding="VALID",
        dimension_numbers=("NCH", "OIH", "NCH"))            # (B, d_model, L)
    return jnp.transpose(y, (0, 2, 1))                      # (B, L, d_model)


def ref_forward(x, x_mark, w_conv, w_lin):
    return _circular_conv_ref(x, w_conv) + x_mark @ w_lin.T


if __name__ == "__main__":
    B, L, c_in, d_model, d_inp = 2, 16, 4, 32, 4  # freq='h' -> d_inp=4

    key = jax.random.PRNGKey(0)
    k1, k2, k3, k4, k5 = jax.random.split(key, 5)

    x = jax.random.normal(k1, (B, L, c_in), jnp.float32)
    x_mark = jax.random.normal(k2, (B, L, d_inp), jnp.float32)

    # deterministic parameter init (kaiming-normal-like conv, scaled normal linear)
    conv_std = math.sqrt(2.0 / (c_in * 3))
    w_conv = jax.random.normal(k3, (d_model, c_in, 3), jnp.float32) * conv_std
    w_lin = jax.random.normal(k4, (d_model, d_inp), jnp.float32) * (1.0 / math.sqrt(d_inp))

    ref = ref_forward(x, x_mark, w_conv, w_lin)

    # f32 path (tight tolerance)
    out = jax.block_until_ready(data_embedding_wo_pos(x, x_mark, w_conv, w_lin))
    assert out.shape == (B, L, d_model), out.shape
    assert jnp.allclose(out, ref, atol=1e-4, rtol=1e-4), float(jnp.max(jnp.abs(out - ref)))

    # bf16 I/O path (halves the dominant HBM streams; f32 accumulation in-kernel)
    out_bf16 = jax.block_until_ready(
        data_embedding_wo_pos(x, x_mark, w_conv, w_lin, compute_dtype=jnp.bfloat16))
    assert out_bf16.shape == (B, L, d_model), out_bf16.shape
    assert jnp.allclose(out_bf16.astype(jnp.float32), ref, atol=1e-1, rtol=1e-1), \
        float(jnp.max(jnp.abs(out_bf16.astype(jnp.float32) - ref)))

    # broadcast branch (a.shape[0] != b.shape[0] in the PyTorch module)
    x4 = jax.random.normal(k5, (2 * B, L, c_in), jnp.float32)
    a4 = _circular_conv_ref(x4, w_conv)
    b2 = x_mark @ w_lin.T
    ref_bc = (a4.reshape(B, 2, L, d_model) + b2[:, None]).reshape(2 * B, L, d_model)
    out_bc = jax.block_until_ready(data_embedding_wo_pos(x4, x_mark, w_conv, w_lin))
    assert out_bc.shape == (2 * B, L, d_model), out_bc.shape
    assert jnp.allclose(out_bc, ref_bc, atol=1e-4, rtol=1e-4), \
        float(jnp.max(jnp.abs(out_bc - ref_bc)))

    print("KERNEL_OK")
</pallas_src>

<mosaic_0001>
module attributes {stable_mosaic.version = 11 : i64} {
  func.func @embed_kernel(%arg0: i32, %arg1: memref<1x16x4xf32, #tpu.memory_space<vmem>>, %arg2: memref<1x16x4xf32, #tpu.memory_space<vmem>>, %arg3: memref<4x32xf32, #tpu.memory_space<vmem>>, %arg4: memref<4x32xf32, #tpu.memory_space<vmem>>, %arg5: memref<4x32xf32, #tpu.memory_space<vmem>>, %arg6: memref<4x32xf32, #tpu.memory_space<vmem>>, %arg7: memref<16x32xf32, #tpu.memory_space<vmem>>) attributes {dimension_semantics = [#tpu.dimension_semantics<parallel>], iteration_bounds = array<i64: 2>, scalar_prefetch = 0 : i64, scratch_operands = 0 : i64, tpu.core_type = #tpu.core_type<tc>, window_params = [{transform_indices = @transform_0, window_bounds = array<i64: 1, 16, 4>}, {transform_indices = @transform_1, window_bounds = array<i64: 1, 16, 4>}, {pipeline_mode = #tpu.pipeline_mode<synchronous>, transform_indices = @transform_2, window_bounds = array<i64: 4, 32>}, {pipeline_mode = #tpu.pipeline_mode<synchronous>, transform_indices = @transform_3, window_bounds = array<i64: 4, 32>}, {pipeline_mode = #tpu.pipeline_mode<synchronous>, transform_indices = @transform_4, window_bounds = array<i64: 4, 32>}, {pipeline_mode = #tpu.pipeline_mode<synchronous>, transform_indices = @transform_5, window_bounds = array<i64: 4, 32>}, {transform_indices = @transform_6, window_bounds = array<i64: 16, 32>}]} {
    %c0 = arith.constant 0 : index
    %c0_0 = arith.constant 0 : index
    %c0_1 = arith.constant 0 : index
    %0 = vector.load %arg1[%c0, %c0_0, %c0_1] : memref<1x16x4xf32, #tpu.memory_space<vmem>>, vector<1x16x4xf32>
    %c1_i32 = arith.constant 1 : i32
    %1 = tpu.dynamic_rotate %0 by %c1_i32 dim 1 : vector<1x16x4xf32>, i32 -> vector<1x16x4xf32>
    %c15_i32 = arith.constant 15 : i32
    %2 = tpu.dynamic_rotate %0 by %c15_i32 dim 1 : vector<1x16x4xf32>, i32 -> vector<1x16x4xf32>
    %3 = vector.shape_cast %0 : vector<1x16x4xf32> to vector<16x4xf32>
    %4 = vector.shape_cast %1 : vector<1x16x4xf32> to vector<16x4xf32>
    %5 = vector.shape_cast %2 : vector<1x16x4xf32> to vector<16x4xf32>
    %c0_2 = arith.constant 0 : index
    %c0_3 = arith.constant 0 : index
    %c0_4 = arith.constant 0 : index
    %6 = vector.load %arg2[%c0_2, %c0_3, %c0_4] : memref<1x16x4xf32, #tpu.memory_space<vmem>>, vector<1x16x4xf32>
    %7 = vector.shape_cast %6 : vector<1x16x4xf32> to vector<16x4xf32>
    %c0_5 = arith.constant 0 : index
    %c0_6 = arith.constant 0 : index
    %8 = vector.load %arg4[%c0_5, %c0_6] : memref<4x32xf32, #tpu.memory_space<vmem>>, vector<4x32xf32>
    %cst = arith.constant dense<0.000000e+00> : vector<16x32xf32>
    %9 = tpu.matmul %3, %8, %cst {dimension_numbers = #tpu.dot_dimension_numbers<[1], [0], [0], [1], [0, 0, 1, 1], [], []>} : vector<16x4xf32>, vector<4x32xf32>, vector<16x32xf32> -> vector<16x32xf32>
    %c0_7 = arith.constant 0 : index
    %c0_8 = arith.constant 0 : index
    %10 = vector.load %arg3[%c0_7, %c0_8] : memref<4x32xf32, #tpu.memory_space<vmem>>, vector<4x32xf32>
    %cst_9 = arith.constant dense<0.000000e+00> : vector<16x32xf32>
    %11 = tpu.matmul %4, %10, %cst_9 {dimension_numbers = #tpu.dot_dimension_numbers<[1], [0], [0], [1], [0, 0, 1, 1], [], []>} : vector<16x4xf32>, vector<4x32xf32>, vector<16x32xf32> -> vector<16x32xf32>
    %12 = arith.addf %9, %11 : vector<16x32xf32>
    %c0_10 = arith.constant 0 : index
    %c0_11 = arith.constant 0 : index
    %13 = vector.load %arg5[%c0_10, %c0_11] : memref<4x32xf32, #tpu.memory_space<vmem>>, vector<4x32xf32>
    %cst_12 = arith.constant dense<0.000000e+00> : vector<16x32xf32>
    %14 = tpu.matmul %5, %13, %cst_12 {dimension_numbers = #tpu.dot_dimension_numbers<[1], [0], [0], [1], [0, 0, 1, 1], [], []>} : vector<16x4xf32>, vector<4x32xf32>, vector<16x32xf32> -> vector<16x32xf32>
    %15 = arith.addf %12, %14 : vector<16x32xf32>
    %c0_13 = arith.constant 0 : index
    %c0_14 = arith.constant 0 : index
    %16 = vector.load %arg6[%c0_13, %c0_14] : memref<4x32xf32, #tpu.memory_space<vmem>>, vector<4x32xf32>
    %cst_15 = arith.constant dense<0.000000e+00> : vector<16x32xf32>
    %17 = tpu.matmul %7, %16, %cst_15 {dimension_numbers = #tpu.dot_dimension_numbers<[1], [0], [0], [1], [0, 0, 1, 1], [], []>} : vector<16x4xf32>, vector<4x32xf32>, vector<16x32xf32> -> vector<16x32xf32>
    %18 = arith.addf %15, %17 : vector<16x32xf32>
    %c0_16 = arith.constant 0 : index
    %c0_17 = arith.constant 0 : index
    %19 = vector.load %arg7[%c0_16, %c0_17] : memref<16x32xf32, #tpu.memory_space<vmem>>, vector<16x32xf32>
    tpu.vector_store %arg7[%c0_16, %c0_17], %18 {strides = array<i32>} : memref<16x32xf32, #tpu.memory_space<vmem>>, vector<16x32xf32>,
    return
  }
  func.func @transform_0(%arg0: i32) -> (i32, i32, i32) {
    %c0_i32 = arith.constant 0 : i32
    %c0_i32_0 = arith.constant 0 : i32
    %c0_i32_1 = arith.constant 0 : i32
    return %arg0, %c0_i32, %c0_i32_0 : i32, i32, i32
  }
  func.func @transform_1(%arg0: i32) -> (i32, i32, i32) {
    %c0_i32 = arith.constant 0 : i32
    %c0_i32_0 = arith.constant 0 : i32
    %c0_i32_1 = arith.constant 0 : i32
    return %arg0, %c0_i32, %c0_i32_0 : i32, i32, i32
  }
  func.func @transform_2(%arg0: i32) -> (i32, i32) {
    %c0_i32 = arith.constant 0 : i32
    %c0_i32_0 = arith.constant 0 : i32
    %c0_i32_1 = arith.constant 0 : i32
    return %c0_i32, %c0_i32_0 : i32, i32
  }
  func.func @transform_3(%arg0: i32) -> (i32, i32) {
    %c0_i32 = arith.constant 0 : i32
    %c0_i32_0 = arith.constant 0 : i32
    %c0_i32_1 = arith.constant 0 : i32
    return %c0_i32, %c0_i32_0 : i32, i32
  }
  func.func @transform_4(%arg0: i32) -> (i32, i32) {
    %c0_i32 = arith.constant 0 : i32
    %c0_i32_0 = arith.constant 0 : i32
    %c0_i32_1 = arith.constant 0 : i32
    return %c0_i32, %c0_i32_0 : i32, i32
  }
  func.func @transform_5(%arg0: i32) -> (i32, i32) {
    %c0_i32 = arith.constant 0 : i32
    %c0_i32_0 = arith.constant 0 : i32
    %c0_i32_1 = arith.constant 0 : i32
    return %c0_i32, %c0_i32_0 : i32, i32
  }
  func.func @transform_6(%arg0: i32) -> (i32, i32) {
    %c0_i32 = arith.constant 0 : i32
    %c0_i32_0 = arith.constant 0 : i32
    return %arg0, %c0_i32 : i32, i32
  }
}

</mosaic_0001>

<llo_original>
// kernel: tpu_custom_call.1
$region0: #{tpu_custom_call.1}
  #allocation0 [shape = 'u32[]', space=smem, size = 0x4, offset = 0x4, fixed_abs, tag = 'smem constant byte address 0x4 - core index']
  #allocation1 [shape = 'u32[144,128]{1,0:T(1,128)}', space=vmem, size = 0x12000, scoped, tag = 'internal scratch']
  %s0 = inlined_call_operand.vmem [shape: f32[2,16,4], index: 0, kind: input, shape index: {}]
  %s1 = inlined_call_operand.vmem [shape: f32[2,16,4], index: 1, kind: input, shape index: {}]
  %s2 = inlined_call_operand.vmem [shape: f32[4,32], index: 2, kind: input, shape index: {}]
  %s3 = inlined_call_operand.vmem [shape: f32[4,32], index: 3, kind: input, shape index: {}]
  %s4 = inlined_call_operand.vmem [shape: f32[4,32], index: 4, kind: input, shape index: {}]
  %s5 = inlined_call_operand.vmem [shape: f32[4,32], index: 5, kind: input, shape index: {}]
  %s6 = inlined_call_operand.hbm [shape: f32[32,32], index: 6, kind: output, shape index: {}]
  %s7 = sld [smem:[#allocation0]]
  $region57: #{tpu_custom_call.1} parent=0
    _
  %s9 = ssub.s32 1, %s7
  %s10 = scalar_select 0, %s9, %s7
  $region1: #{tpu_custom_call.1} parent=0
    #allocation2 [shape = 'u8[16384]{0}', space=vmem, size = 0x4000, scoped, tag = 'output window, operand 0']
    #allocation3 [shape = 's32[2]{0}', space=sflag, size = 0x8, scoped, tag = 'scoped memory for tpu_custom_call.1']
    %11 = vsyncpa [#allocation3], 0
    %s12 = scalar_lea.sflag [#allocation3], 1
    %13 = vsyncpa %s12, 0
    loop: start=0, step=1, limit=4
    $region2: #{tpu_custom_call.1} parent=1 // loop_pre_header
      _
    $region3: #{tpu_custom_call.1} parent=1 // loop_header
      %s15 = sphi 0, %s19
      %p16 = scmp.ge.s32.totalorder %s15, 4
      %s25 = sphi 0, %s27
      %s28 = sphi 0, %s25
      %s29 = sphi 0, %s28
      %s45 = sphi 0, %s29
      %s51 = sphi 0, %s53
      %s54 = sphi 0, %s51
      %s55 = sphi 0, %s54
      %s71 = sphi 0, %s55
      %s75 = sphi 0, %s75
      %s77 = sphi 0, %s75
      %s78 = sphi 0, %s77
      %s92 = sphi 0, %s78
      %s96 = sphi 0, %s96
      %s98 = sphi 0, %s96
      %s99 = sphi 0, %s98
      %s113 = sphi 0, %s99
      %s117 = sphi 0, %s117
      %s119 = sphi 0, %s117
      %s120 = sphi 0, %s119
      %s134 = sphi 0, %s120
      %s138 = sphi 0, %s138
      %s140 = sphi 0, %s138
      %s141 = sphi 0, %s140
      %s155 = sphi 0, %s141
      %s161 = sphi 0, %s163
      %s164 = sphi 0, %s161
      %s165 = sphi 0, %s164
      %s181 = sphi 0, %s165
    $region4: #{tpu_custom_call.1} parent=1 // loop_header_branch
      %18 = sbr.rel (%p16) target = $region8
    $region5: #{tpu_custom_call.1} parent=1 // loop_body
      %s20 = ssub.s32 %s15, 1
      %s21 = ssub.s32 %s15, 2
      %s22 = sadd.s32 %s15, 1
      %s23 = ssub.s32 %s15, %s22
      %p24 = scmp.eq.s32.totalorder %s23, 0
      %s26 = sadd.s32 %s25, 1
      %s27 = scalar_select %p24, %s25, %s26
      %p30 = pneg %p24
      %p31 = scmp.eq.s32.totalorder %s15, 1
      %p32 = por %p30, %p31
      %p33 = scmp.ne.s32.totalorder %s25, %s28
      %p34 = scmp.eq.s32.totalorder %s15, 0
      %p35 = por %p33, %p34
      %p36 = scmp.ne.s32.totalorder %s25, %s28
      %p37 = scmp.eq.s32.totalorder %s20, 1
      %p38 = por %p36, %p37
      %p39 = scmp.ne.s32.totalorder %s28, %s29
      %p40 = scmp.eq.s32.totalorder %s20, 0
      %p41 = por %p39, %p40
      %p42 = scmp.ne.s32.totalorder %s28, %s29
      %p43 = scmp.eq.s32.totalorder %s21, 1
      %p44 = por %p42, %p43
      %p46 = scmp.ne.s32.totalorder %s29, %s45
      %p47 = scmp.eq.s32.totalorder %s21, 0
      %p48 = por %p46, %p47
      %s49 = ssub.s32 %s15, %s22
      %p50 = scmp.eq.s32.totalorder %s49, 0
      %s52 = sadd.s32 %s51, 1
      %s53 = scalar_select %p50, %s51, %s52
      %p56 = pneg %p50
      %p57 = scmp.eq.s32.totalorder %s15, 1
      %p58 = por %p56, %p57
      %p59 = scmp.ne.s32.totalorder %s51, %s54
      %p60 = scmp.eq.s32.totalorder %s15, 0
      %p61 = por %p59, %p60
      %p62 = scmp.ne.s32.totalorder %s51, %s54
      %p63 = scmp.eq.s32.totalorder %s20, 1
      %p64 = por %p62, %p63
      %p65 = scmp.ne.s32.totalorder %s54, %s55
      %p66 = scmp.eq.s32.totalorder %s20, 0
      %p67 = por %p65, %p66
      %p68 = scmp.ne.s32.totalorder %s54, %s55
      %p69 = scmp.eq.s32.totalorder %s21, 1
      %p70 = por %p68, %p69
      %p72 = scmp.ne.s32.totalorder %s55, %s71
      %p73 = scmp.eq.s32.totalorder %s21, 0
      %p74 = por %p72, %p73
      %s76 = sadd.s32 %s75, 1
      %p79 = scmp.eq.s32.totalorder %s15, 1
      %p80 = scmp.ne.s32.totalorder %s75, %s77
      %p81 = scmp.eq.s32.totalorder %s15, 0
      %p82 = por %p80, %p81
      %p83 = scmp.ne.s32.totalorder %s75, %s77
      %p84 = scmp.eq.s32.totalorder %s20, 1
      %p85 = por %p83, %p84
      %p86 = scmp.ne.s32.totalorder %s77, %s78
      %p87 = scmp.eq.s32.totalorder %s20, 0
      %p88 = por %p86, %p87
      %p89 = scmp.ne.s32.totalorder %s77, %s78
      %p90 = scmp.eq.s32.totalorder %s21, 1
      %p91 = por %p89, %p90
      %p93 = scmp.ne.s32.totalorder %s78, %s92
      %p94 = scmp.eq.s32.totalorder %s21, 0
      %p95 = por %p93, %p94
      %s97 = sadd.s32 %s96, 1
      %p100 = scmp.eq.s32.totalorder %s15, 1
      %p101 = scmp.ne.s32.totalorder %s96, %s98
      %p102 = scmp.eq.s32.totalorder %s15, 0
      %p103 = por %p101, %p102
      %p104 = scmp.ne.s32.totalorder %s96, %s98
      %p105 = scmp.eq.s32.totalorder %s20, 1
      %p106 = por %p104, %p105
      %p107 = scmp.ne.s32.totalorder %s98, %s99
      %p108 = scmp.eq.s32.totalorder %s20, 0
      %p109 = por %p107, %p108
      %p110 = scmp.ne.s32.totalorder %s98, %s99
      %p111 = scmp.eq.s32.totalorder %s21, 1
      %p112 = por %p110, %p111
      %p114 = scmp.ne.s32.totalorder %s99, %s113
      %p115 = scmp.eq.s32.totalorder %s21, 0
      %p116 = por %p114, %p115
      %s118 = sadd.s32 %s117, 1
      %p121 = scmp.eq.s32.totalorder %s15, 1
      %p122 = scmp.ne.s32.totalorder %s117, %s119
      %p123 = scmp.eq.s32.totalorder %s15, 0
      %p124 = por %p122, %p123
      %p125 = scmp.ne.s32.totalorder %s117, %s119
      %p126 = scmp.eq.s32.totalorder %s20, 1
      %p127 = por %p125, %p126
      %p128 = scmp.ne.s32.totalorder %s119, %s120
      %p129 = scmp.eq.s32.totalorder %s20, 0
      %p130 = por %p128, %p129
      %p131 = scmp.ne.s32.totalorder %s119, %s120
      %p132 = scmp.eq.s32.totalorder %s21, 1
      %p133 = por %p131, %p132
      %p135 = scmp.ne.s32.totalorder %s120, %s134
      %p136 = scmp.eq.s32.totalorder %s21, 0
      %p137 = por %p135, %p136
      %s139 = sadd.s32 %s138, 1
      %p142 = scmp.eq.s32.totalorder %s15, 1
      %p143 = scmp.ne.s32.totalorder %s138, %s140
      %p144 = scmp.eq.s32.totalorder %s15, 0
      %p145 = por %p143, %p144
      %p146 = scmp.ne.s32.totalorder %s138, %s140
      %p147 = scmp.eq.s32.totalorder %s20, 1
      %p148 = por %p146, %p147
      %p149 = scmp.ne.s32.totalorder %s140, %s141
      %p150 = scmp.eq.s32.totalorder %s20, 0
      %p151 = por %p149, %p150
      %p152 = scmp.ne.s32.totalorder %s140, %s141
      %p153 = scmp.eq.s32.totalorder %s21, 1
      %p154 = por %p152, %p153
      %p156 = scmp.ne.s32.totalorder %s141, %s155
      %p157 = scmp.eq.s32.totalorder %s21, 0
      %p158 = por %p156, %p157
      %s159 = ssub.s32 %s15, %s22
      %p160 = scmp.eq.s32.totalorder %s159, 0
      %s162 = sadd.s32 %s161, 1
      %s163 = scalar_select %p160, %s161, %s162
      %p166 = pneg %p160
      %p167 = scmp.eq.s32.totalorder %s15, 1
      %p168 = por %p166, %p167
      %p169 = scmp.ne.s32.totalorder %s161, %s164
      %p170 = scmp.eq.s32.totalorder %s15, 0
      %p171 = por %p169, %p170
      %p172 = scmp.ne.s32.totalorder %s161, %s164
      %p173 = scmp.eq.s32.totalorder %s20, 1
      %p174 = por %p172, %p173
      %p175 = scmp.ne.s32.totalorder %s164, %s165
      %p176 = scmp.eq.s32.totalorder %s20, 0
      %p177 = por %p175, %p176
      %p178 = scmp.ne.s32.totalorder %s164, %s165
      %p179 = scmp.eq.s32.totalorder %s21, 1
      %p180 = por %p178, %p179
      %p182 = scmp.ne.s32.totalorder %s165, %s181
      %p183 = scmp.eq.s32.totalorder %s21, 0
      %p184 = por %p182, %p183
      %p185 = scmp.le.s32.totalorder 1, %s15
      %p186 = scmp.lt.s32.totalorder %s15, 3
      %p187 = pnand %p185, %p186
      %p188 = pneg %p187
      // Predicated region
      $region9: #{tpu_custom_call.1} parent=5 // pred_check
        _
      $region10: #{tpu_custom_call.1} parent=5 // pred_check_branch
        %190 = sbr.rel (%p187) target = $region12
      $region11: #{tpu_custom_call.1} parent=5 // pred_region
        %s191 = ssub.s32 %s15, 1
        // Predicated region
        $region13: #{tpu_custom_call.1} parent=11 // pred_check
          %p192 = pneg %p88
        $region14: #{tpu_custom_call.1} parent=11 // pred_check_branch
          %194 = sbr.rel (%p192) target = $region16
        $region15: #{tpu_custom_call.1} parent=11 // pred_region
          _
        $region16: #{tpu_custom_call.1} parent=11 // pred_fallthru
          _
        // Predicated region
        $region17: #{tpu_custom_call.1} parent=11 // pred_check
          %p195 = pneg %p109
        $region18: #{tpu_custom_call.1} parent=11 // pred_check_branch
          %197 = sbr.rel (%p195) target = $region20
        $region19: #{tpu_custom_call.1} parent=11 // pred_region
          _
        $region20: #{tpu_custom_call.1} parent=11 // pred_fallthru
          _
        // Predicated region
        $region21: #{tpu_custom_call.1} parent=11 // pred_check
          %p198 = pneg %p130
        $region22: #{tpu_custom_call.1} parent=11 // pred_check_branch
          %200 = sbr.rel (%p198) target = $region24
        $region23: #{tpu_custom_call.1} parent=11 // pred_region
          _
        $region24: #{tpu_custom_call.1} parent=11 // pred_fallthru
          _
        // Predicated region
        $region25: #{tpu_custom_call.1} parent=11 // pred_check
          %p201 = pneg %p151
        $region26: #{tpu_custom_call.1} parent=11 // pred_check_branch
          %203 = sbr.rel (%p201) target = $region28
        $region27: #{tpu_custom_call.1} parent=11 // pred_region
          _
        $region28: #{tpu_custom_call.1} parent=11 // pred_fallthru
          _
      $region12: #{tpu_custom_call.1} parent=5 // pred_fallthru
        _
      %p204 = scmp.lt.s32.totalorder %s15, 2
      // Predicated region
      $region29: #{tpu_custom_call.1} parent=5 // pred_check
        %p205 = pneg %p204
      $region30: #{tpu_custom_call.1} parent=5 // pred_check_branch
        %207 = sbr.rel (%p205) target = $region32
      $region31: #{tpu_custom_call.1} parent=5 // pred_region
        // Predicated region
        $region33: #{tpu_custom_call.1} parent=31 // pred_check
          %p208 = pneg %p35
        $region34: #{tpu_custom_call.1} parent=31 // pred_check_branch
          %210 = sbr.rel (%p208) target = $region36
        $region35: #{tpu_custom_call.1} parent=31 // pred_region
          %p211 = scmp.lt.s32.totalorder %s15, 1
          %s212 = scalar_select %p211, %s15, 1
          %s213 = smul.addr %s212, 2
          %s214 = smul.addr %s213, 8
          %s215 = scalar_lea.vmem %s0, %s214
        $region36: #{tpu_custom_call.1} parent=31 // pred_fallthru
          _
        // Predicated region
        $region37: #{tpu_custom_call.1} parent=31 // pred_check
          %p216 = pneg %p61
        $region38: #{tpu_custom_call.1} parent=31 // pred_check_branch
          %218 = sbr.rel (%p216) target = $region40
        $region39: #{tpu_custom_call.1} parent=31 // pred_region
          %p219 = scmp.lt.s32.totalorder %s15, 1
          %s220 = scalar_select %p219, %s15, 1
          %s221 = smul.addr %s220, 2
          %s222 = smul.addr %s221, 8
          %s223 = scalar_lea.vmem %s1, %s222
        $region40: #{tpu_custom_call.1} parent=31 // pred_fallthru
          _
      $region32: #{tpu_custom_call.1} parent=5 // pred_fallthru
        _
      %p224 = scmp.le.s32.totalorder 1, %s15
      %p225 = scmp.lt.s32.totalorder %s15, 3
      %p226 = pnand %p224, %p225
      %p227 = pneg %p226
      // Predicated region
      $region41: #{tpu_custom_call.1} parent=5 // pred_check
        _
      $region42: #{tpu_custom_call.1} parent=5 // pred_check_branch
        %229 = sbr.rel (%p226) target = $region44
      $region43: #{tpu_custom_call.1} parent=5 // pred_region
        %s230 = ssub.s32 %s15, 1
        %p231 = scmp.lt.s32.totalorder %s20, 1
        %s232 = scalar_select %p231, %s20, 1
        %s233 = smul.addr %s232, 2
        %s234 = smul.addr %s233, 8
        %s235 = scalar_lea.vmem %s0, %s234
        %p236 = pneg %p41
        %p237 = pneg %p38
        %p238 = scmp.lt.s32.totalorder %s20, 1
        %s239 = scalar_select %p238, %s20, 1
        %s240 = smul.addr %s239, 2
        %s241 = smul.addr %s240, 8
        %s242 = scalar_lea.vmem %s1, %s241
        %p243 = pneg %p67
        %p244 = pneg %p64
        %p245 = pneg %p88
        %p246 = pneg %p85
        %p247 = pneg %p109
        %p248 = pneg %p106
        %p249 = pneg %p130
        %p250 = pneg %p127
        %p251 = pneg %p151
        %p252 = pneg %p148
        %p253 = pneg %p177
        %p254 = pneg %p174
        %s255 = sand.u32 %s164, 1
        %s256 = scalar_lea.sflag [#allocation3], %s255
        %s257 = sand.u32 %s164, 1
        %s258 = smul.addr %s257, 16
        %s259 = scalar_lea.vmem [#allocation2], %s258
        %p260 = scmp.lt.s32.totalorder %s20, 1
        %s261 = scalar_select %p260, %s20, 1
        %s262 = smul.addr %s261, 2
        %s263 = smul.addr %s262, 8
        %s264 = scalar_lea.vmem %s0, %s263
        %p265 = scmp.lt.s32.totalorder %s20, 1
        %s266 = scalar_select %p265, %s20, 1
        %s267 = smul.addr %s266, 2
        %s268 = smul.addr %s267, 8
        %s269 = scalar_lea.vmem %s1, %s268
        %s270 = smul.u32 2, %s20
        %v271 = vld [vmem:[%s264] sm:$0xff]
        %v272 = vld [vmem:[%s264 + $0x8] sm:$0xff]
        %v273 = vrot.slane %v271, 7
        %v274 = vrot.slane %v272, 7
        %v275 = vlaneseq
        %v276 = vshrl.u32 %v275, 7
        %vm277 = vcmp.lt.s32.totalorder %v276, 1
        %v278 = vsel %vm277, %v273, %v274
        %v279 = vsel %vm277, %v274, %v273
        %v280 = vrot.slane %v271, 1
        %v281 = vrot.slane %v272, 1
        %vm282 = vcmp.lt.s32.totalorder %v276, 7
        %v283 = vsel %vm282, %v280, %v281
        %v284 = vsel %vm282, %v281, %v280
        %v285 = vld [vmem:[%s269] sm:$0xff]
        %v286 = vld [vmem:[%s269 + $0x8] sm:$0xff]
        %v287 = vld [vmem:[%s3] sm:$0xf]
        %v288 = vld [vmem:[%s2] sm:$0xf]
        %vm289 = vcmask 31744
        %v291 = vsel %vm289, %v279, 0
        %v294 = vsel %vm289, %v278, 0
        %vm296 = vcmask 1043456
        %v298 = vsel %vm296, %v288, 0
        %300 = vmatprep.subr.mxu0 0.0
        %301 = vmatpush1.msra.mxu0 %v298
        %302 = vmatprep.subr.mxu0 0.0
        %303 = vmatpush1.msra.mxu0 0.0
        %304 = vmatprep.subr.mxu0 0.0
        %305 = vmatpush1.msra.mxu0 0.0
        %306 = vmatprep.subr.mxu0 0.0
        %307 = vmatpush1.msra.mxu0 0.0
        %308 = vmatprep.subr.mxu0 0.0
        %309 = vmatpush1.msra.mxu0 0.0
        %310 = vmatprep.subr.mxu0 0.0
        %311 = vmatpush1.msra.mxu0 0.0
        %312 = vmatprep.subr.mxu0 0.0
        %313 = vmatpush1.msra.mxu0 0.0
        %314 = vmatprep.subr.mxu0 0.0
        %315 = vmatpush1.msra.mxu0 0.0
        %316 = vmatprep.subr.mxu0 0.0
        %317 = vmatpush1.msra.mxu0 0.0
        %318 = vmatprep.subr.mxu0 0.0
        %319 = vmatpush1.msra.mxu0 0.0
        %320 = vmatprep.subr.mxu0 0.0
        %321 = vmatpush1.msra.mxu0 0.0
        %322 = vmatprep.subr.mxu0 0.0
        %323 = vmatpush1.msra.mxu0 0.0
        %324 = vmatprep.subr.mxu0 0.0
        %325 = vmatpush1.msra.mxu0 0.0
        %326 = vmatprep.subr.mxu0 0.0
        %327 = vmatpush1.msra.mxu0 0.0
        %328 = vmatprep.subr.mxu0 0.0
        %329 = vmatpush1.msra.mxu0 0.0
        %330 = vmatprep.subr.mxu0 0.0
        %331 = vmatpush1.msra.mxu0 0.0
        %332 = vmatprep.subr.mxu0 0.0
        %333 = vmatpush1.msra.mxu0 0.0
        %334 = vmatprep.subr.mxu0 0.0
        %335 = vmatpush1.msra.mxu0 0.0
        %336 = vmatprep.subr.mxu0 0.0
        %337 = vmatpush1.msra.mxu0 0.0
        %338 = vmatprep.subr.mxu0 0.0
        %339 = vmatpush1.msra.mxu0 0.0
        %340 = vmatprep.subr.mxu0 0.0
        %341 = vmatpush1.msra.mxu0 0.0
        %342 = vmatprep.subr.mxu0 0.0
        %343 = vmatpush1.msra.mxu0 0.0
        %344 = vmatprep.subr.mxu0 0.0
        %345 = vmatpush1.msra.mxu0 0.0
        %346 = vmatprep.subr.mxu0 0.0
        %347 = vmatpush1.msra.mxu0 0.0
        %348 = vmatprep.subr.mxu0 0.0
        %349 = vmatpush1.msra.mxu0 0.0
        %350 = vmatprep.subr.mxu0 0.0
        %351 = vmatpush1.msra.mxu0 0.0
        %352 = vmatprep.subr.mxu0 0.0
        %353 = vmatpush1.msra.mxu0 0.0
        %354 = vmatprep.subr.mxu0 0.0
        %355 = vmatpush1.msra.mxu0 0.0
        %356 = vmatprep.subr.mxu0 0.0
        %357 = vmatpush1.msra.mxu0 0.0
        %358 = vmatprep.subr.mxu0 0.0
        %359 = vmatpush1.msra.mxu0 0.0
        %360 = vmatprep.subr.mxu0 0.0
        %361 = vmatpush1.msra.mxu0 0.0
        %362 = vmatprep.subr.mxu0 0.0
        %363 = vmatpush1.msra.mxu0 0.0
        %364 = vmatprep.mubr.f32.mxu0 0.0
        %365 = vmatmul.mubr.f32.gmra.mrb[0].mxu0 %v291
        %v366 = vpop.f32.mrb[0].mxu0
        %v367 = vadd.f32 0.0, %v366
        %v368 = vpop.f32.mrb[0].mxu0
        %369 = vmatprep.mubr.f32.mxu0 0.0
        %370 = vmatmul.mubr.f32.gmra.mrb[0].mxu0 %v294
        %v371 = vpop.f32.mrb[0].mxu0
        %v372 = vadd.f32 0.0, %v371
        %v373 = vpop.f32.mrb[0].mxu0
        %374 = vdwg.mxu0
        %v376 = vsel %vm289, %v271, 0
        %v379 = vsel %vm289, %v272, 0
        %v382 = vsel %vm296, %v287, 0
        %384 = vmatprep.subr.mxu0 0.0
        %385 = vmatpush1.msra.mxu0 %v382
        %386 = vmatprep.subr.mxu0 0.0
        %387 = vmatpush1.msra.mxu0 0.0
        %388 = vmatprep.subr.mxu0 0.0
        %389 = vmatpush1.msra.mxu0 0.0
        %390 = vmatprep.subr.mxu0 0.0
        %391 = vmatpush1.msra.mxu0 0.0
        %392 = vmatprep.subr.mxu0 0.0
        %393 = vmatpush1.msra.mxu0 0.0
        %394 = vmatprep.subr.mxu0 0.0
        %395 = vmatpush1.msra.mxu0 0.0
        %396 = vmatprep.subr.mxu0 0.0
        %397 = vmatpush1.msra.mxu0 0.0
        %398 = vmatprep.subr.mxu0 0.0
        %399 = vmatpush1.msra.mxu0 0.0
        %400 = vmatprep.subr.mxu0 0.0
        %401 = vmatpush1.msra.mxu0 0.0
        %402 = vmatprep.subr.mxu0 0.0
        %403 = vmatpush1.msra.mxu0 0.0
        %404 = vmatprep.subr.mxu0 0.0
        %405 = vmatpush1.msra.mxu0 0.0
        %406 = vmatprep.subr.mxu0 0.0
        %407 = vmatpush1.msra.mxu0 0.0
        %408 = vmatprep.subr.mxu0 0.0
        %409 = vmatpush1.msra.mxu0 0.0
        %410 = vmatprep.subr.mxu0 0.0
        %411 = vmatpush1.msra.mxu0 0.0
        %412 = vmatprep.subr.mxu0 0.0
        %413 = vmatpush1.msra.mxu0 0.0
        %414 = vmatprep.subr.mxu0 0.0
        %415 = vmatpush1.msra.mxu0 0.0
        %416 = vmatprep.subr.mxu0 0.0
        %417 = vmatpush1.msra.mxu0 0.0
        %418 = vmatprep.subr.mxu0 0.0
        %419 = vmatpush1.msra.mxu0 0.0
        %420 = vmatprep.subr.mxu0 0.0
        %421 = vmatpush1.msra.mxu0 0.0
        %422 = vmatprep.subr.mxu0 0.0
        %423 = vmatpush1.msra.mxu0 0.0
        %424 = vmatprep.subr.mxu0 0.0
        %425 = vmatpush1.msra.mxu0 0.0
        %426 = vmatprep.subr.mxu0 0.0
        %427 = vmatpush1.msra.mxu0 0.0
        %428 = vmatprep.subr.mxu0 0.0
        %429 = vmatpush1.msra.mxu0 0.0
        %430 = vmatprep.subr.mxu0 0.0
        %431 = vmatpush1.msra.mxu0 0.0
        %432 = vmatprep.subr.mxu0 0.0
        %433 = vmatpush1.msra.mxu0 0.0
        %434 = vmatprep.subr.mxu0 0.0
        %435 = vmatpush1.msra.mxu0 0.0
        %436 = vmatprep.subr.mxu0 0.0
        %437 = vmatpush1.msra.mxu0 0.0
        %438 = vmatprep.subr.mxu0 0.0
        %439 = vmatpush1.msra.mxu0 0.0
        %440 = vmatprep.subr.mxu0 0.0
        %441 = vmatpush1.msra.mxu0 0.0
        %442 = vmatprep.subr.mxu0 0.0
        %443 = vmatpush1.msra.mxu0 0.0
        %444 = vmatprep.subr.mxu0 0.0
        %445 = vmatpush1.msra.mxu0 0.0
        %446 = vmatprep.subr.mxu0 0.0
        %447 = vmatpush1.msra.mxu0 0.0
        %448 = vmatprep.mubr.f32.mxu0 0.0
        %449 = vmatmul.mubr.f32.gmra.mrb[0].mxu0 %v376
        %v450 = vpop.f32.mrb[0].mxu0
        %v451 = vadd.f32 %v367, %v450
        %v452 = vpop.f32.mrb[0].mxu0
        %453 = vmatprep.mubr.f32.mxu0 0.0
        %454 = vmatmul.mubr.f32.gmra.mrb[0].mxu0 %v379
        %v455 = vpop.f32.mrb[0].mxu0
        %v456 = vadd.f32 %v372, %v455
        %v457 = vpop.f32.mrb[0].mxu0
        %458 = vdwg.mxu0
        %v459 = vld [vmem:[%s4] sm:$0xf]
        %v461 = vsel %vm289, %v283, 0
        %v464 = vsel %vm289, %v284, 0
        %v467 = vsel %vm296, %v459, 0
        %469 = vmatprep.subr.mxu0 0.0
        %470 = vmatpush1.msra.mxu0 %v467
        %471 = vmatprep.subr.mxu0 0.0
        %472 = vmatpush1.msra.mxu0 0.0
        %473 = vmatprep.subr.mxu0 0.0
        %474 = vmatpush1.msra.mxu0 0.0
        %475 = vmatprep.subr.mxu0 0.0
        %476 = vmatpush1.msra.mxu0 0.0
        %477 = vmatprep.subr.mxu0 0.0
        %478 = vmatpush1.msra.mxu0 0.0
        %479 = vmatprep.subr.mxu0 0.0
        %480 = vmatpush1.msra.mxu0 0.0
        %481 = vmatprep.subr.mxu0 0.0
        %482 = vmatpush1.msra.mxu0 0.0
        %483 = vmatprep.subr.mxu0 0.0
        %484 = vmatpush1.msra.mxu0 0.0
        %485 = vmatprep.subr.mxu0 0.0
        %486 = vmatpush1.msra.mxu0 0.0
        %487 = vmatprep.subr.mxu0 0.0
        %488 = vmatpush1.msra.mxu0 0.0
        %489 = vmatprep.subr.mxu0 0.0
        %490 = vmatpush1.msra.mxu0 0.0
        %491 = vmatprep.subr.mxu0 0.0
        %492 = vmatpush1.msra.mxu0 0.0
        %493 = vmatprep.subr.mxu0 0.0
        %494 = vmatpush1.msra.mxu0 0.0
        %495 = vmatprep.subr.mxu0 0.0
        %496 = vmatpush1.msra.mxu0 0.0
        %497 = vmatprep.subr.mxu0 0.0
        %498 = vmatpush1.msra.mxu0 0.0
        %499 = vmatprep.subr.mxu0 0.0
        %500 = vmatpush1.msra.mxu0 0.0
        %501 = vmatprep.subr.mxu0 0.0
        %502 = vmatpush1.msra.mxu0 0.0
        %503 = vmatprep.subr.mxu0 0.0
        %504 = vmatpush1.msra.mxu0 0.0
        %505 = vmatprep.subr.mxu0 0.0
        %506 = vmatpush1.msra.mxu0 0.0
        %507 = vmatprep.subr.mxu0 0.0
        %508 = vmatpush1.msra.mxu0 0.0
        %509 = vmatprep.subr.mxu0 0.0
        %510 = vmatpush1.msra.mxu0 0.0
        %511 = vmatprep.subr.mxu0 0.0
        %512 = vmatpush1.msra.mxu0 0.0
        %513 = vmatprep.subr.mxu0 0.0
        %514 = vmatpush1.msra.mxu0 0.0
        %515 = vmatprep.subr.mxu0 0.0
        %516 = vmatpush1.msra.mxu0 0.0
        %517 = vmatprep.subr.mxu0 0.0
        %518 = vmatpush1.msra.mxu0 0.0
        %519 = vmatprep.subr.mxu0 0.0
        %520 = vmatpush1.msra.mxu0 0.0
        %521 = vmatprep.subr.mxu0 0.0
        %522 = vmatpush1.msra.mxu0 0.0
        %523 = vmatprep.subr.mxu0 0.0
        %524 = vmatpush1.msra.mxu0 0.0
        %525 = vmatprep.subr.mxu0 0.0
        %526 = vmatpush1.msra.mxu0 0.0
        %527 = vmatprep.subr.mxu0 0.0
        %528 = vmatpush1.msra.mxu0 0.0
        %529 = vmatprep.subr.mxu0 0.0
        %530 = vmatpush1.msra.mxu0 0.0
        %531 = vmatprep.subr.mxu0 0.0
        %532 = vmatpush1.msra.mxu0 0.0
        %533 = vmatprep.mubr.f32.mxu0 0.0
        %534 = vmatmul.mubr.f32.gmra.mrb[0].mxu0 %v461
        %v535 = vpop.f32.mrb[0].mxu0
        %v536 = vadd.f32 0.0, %v535
        %v537 = vpop.f32.mrb[0].mxu0
        %538 = vmatprep.mubr.f32.mxu0 0.0
        %539 = vmatmul.mubr.f32.gmra.mrb[0].mxu0 %v464
        %v540 = vpop.f32.mrb[0].mxu0
        %v541 = vadd.f32 0.0, %v540
        %v542 = vpop.f32.mrb[0].mxu0
        %543 = vdwg.mxu0
        %v544 = vadd.f32 %v451, %v536
        %v545 = vadd.f32 %v456, %v541
        %v546 = vld [vmem:[%s5] sm:$0xf]
        %v548 = vsel %vm289, %v285, 0
        %v551 = vsel %vm289, %v286, 0
        %v554 = vsel %vm296, %v546, 0
        %556 = vmatprep.subr.mxu0 0.0
        %557 = vmatpush1.msra.mxu0 %v554
        %558 = vmatprep.subr.mxu0 0.0
        %559 = vmatpush1.msra.mxu0 0.0
        %560 = vmatprep.subr.mxu0 0.0
        %561 = vmatpush1.msra.mxu0 0.0
        %562 = vmatprep.subr.mxu0 0.0
        %563 = vmatpush1.msra.mxu0 0.0
        %564 = vmatprep.subr.mxu0 0.0
        %565 = vmatpush1.msra.mxu0 0.0
        %566 = vmatprep.subr.mxu0 0.0
        %567 = vmatpush1.msra.mxu0 0.0
        %568 = vmatprep.subr.mxu0 0.0
        %569 = vmatpush1.msra.mxu0 0.0
        %570 = vmatprep.subr.mxu0 0.0
        %571 = vmatpush1.msra.mxu0 0.0
        %572 = vmatprep.subr.mxu0 0.0
        %573 = vmatpush1.msra.mxu0 0.0
        %574 = vmatprep.subr.mxu0 0.0
        %575 = vmatpush1.msra.mxu0 0.0
        %576 = vmatprep.subr.mxu0 0.0
        %577 = vmatpush1.msra.mxu0 0.0
        %578 = vmatprep.subr.mxu0 0.0
        %579 = vmatpush1.msra.mxu0 0.0
        %580 = vmatprep.subr.mxu0 0.0
        %581 = vmatpush1.msra.mxu0 0.0
        %582 = vmatprep.subr.mxu0 0.0
        %583 = vmatpush1.msra.mxu0 0.0
        %584 = vmatprep.subr.mxu0 0.0
        %585 = vmatpush1.msra.mxu0 0.0
        %586 = vmatprep.subr.mxu0 0.0
        %587 = vmatpush1.msra.mxu0 0.0
        %588 = vmatprep.subr.mxu0 0.0
        %589 = vmatpush1.msra.mxu0 0.0
        %590 = vmatprep.subr.mxu0 0.0
        %591 = vmatpush1.msra.mxu0 0.0
        %592 = vmatprep.subr.mxu0 0.0
        %593 = vmatpush1.msra.mxu0 0.0
        %594 = vmatprep.subr.mxu0 0.0
        %595 = vmatpush1.msra.mxu0 0.0
        %596 = vmatprep.subr.mxu0 0.0
        %597 = vmatpush1.msra.mxu0 0.0
        %598 = vmatprep.subr.mxu0 0.0
        %599 = vmatpush1.msra.mxu0 0.0
        %600 = vmatprep.subr.mxu0 0.0
        %601 = vmatpush1.msra.mxu0 0.0
        %602 = vmatprep.subr.mxu0 0.0
        %603 = vmatpush1.msra.mxu0 0.0
        %604 = vmatprep.subr.mxu0 0.0
        %605 = vmatpush1.msra.mxu0 0.0
        %606 = vmatprep.subr.mxu0 0.0
        %607 = vmatpush1.msra.mxu0 0.0
        %608 = vmatprep.subr.mxu0 0.0
        %609 = vmatpush1.msra.mxu0 0.0
        %610 = vmatprep.subr.mxu0 0.0
        %611 = vmatpush1.msra.mxu0 0.0
        %612 = vmatprep.subr.mxu0 0.0
        %613 = vmatpush1.msra.mxu0 0.0
        %614 = vmatprep.subr.mxu0 0.0
        %615 = vmatpush1.msra.mxu0 0.0
        %616 = vmatprep.subr.mxu0 0.0
        %617 = vmatpush1.msra.mxu0 0.0
        %618 = vmatprep.subr.mxu0 0.0
        %619 = vmatpush1.msra.mxu0 0.0
        %620 = vmatprep.mubr.f32.mxu0 0.0
        %621 = vmatmul.mubr.f32.gmra.mrb[0].mxu0 %v548
        %v622 = vpop.f32.mrb[0].mxu0
        %v623 = vadd.f32 0.0, %v622
        %v624 = vpop.f32.mrb[0].mxu0
        %625 = vmatprep.mubr.f32.mxu0 0.0
        %626 = vmatmul.mubr.f32.gmra.mrb[0].mxu0 %v551
        %v627 = vpop.f32.mrb[0].mxu0
        %v628 = vadd.f32 0.0, %v627
        %v629 = vpop.f32.mrb[0].mxu0
        %630 = vdwg.mxu0
        %v631 = vadd.f32 %v544, %v623
        %v632 = vadd.f32 %v545, %v628
        %vm633 = vcmask 261120
        %634 = vst.msk [vmem:[%s259] sm:$0xff] %vm633, %v631
        %635 = vst.msk [vmem:[%s259 + $0x8] sm:$0xff] %vm633, %v632
        %s636 = sand.u32 %s164, 1
        %s637 = scalar_lea.sflag [#allocation3], %s636
        %s638 = sand.u32 %s164, 1
        %s639 = smul.addr %s638, 16
        %s640 = scalar_lea.vmem [#allocation2], %s639
        // Predicated region
        $region45: #{tpu_custom_call.1} parent=43 // pred_check
          %p641 = pneg %p174
        $region46: #{tpu_custom_call.1} parent=43 // pred_check_branch
          %643 = sbr.rel (%p641) target = $region48
        $region47: #{tpu_custom_call.1} parent=43 // pred_region
          %s644 = smul.u32 2, %s20
          %s646 = ssub.s32 256, 256
          %647 = vsyncadd %s637, %s646
          %s648 = smul.addr %s644, 128
          %s649 = scalar_lea.hbm %s6, %s648
          %s650 = sshll.u32 %s640, 4
          %s651 = int_to_ptr.vmem [resolvable:$true] %s650
          %656 = dma.vmem_to_hbm [thread:$0]  %s651, 256, %s649, %s637, 128, 128, 8
        $region48: #{tpu_custom_call.1} parent=43 // pred_fallthru
          _
      $region44: #{tpu_custom_call.1} parent=5 // pred_fallthru
        _
      %p657 = scmp.le.s32.totalorder 2, %s15
      // Predicated region
      $region49: #{tpu_custom_call.1} parent=5 // pred_check
        %p658 = pneg %p657
      $region50: #{tpu_custom_call.1} parent=5 // pred_check_branch
        %660 = sbr.rel (%p658) target = $region52
      $region51: #{tpu_custom_call.1} parent=5 // pred_region
        %s661 = ssub.s32 %s15, 2
        // Predicated region
        $region53: #{tpu_custom_call.1} parent=51 // pred_check
          %p662 = pneg %p180
        $region54: #{tpu_custom_call.1} parent=51 // pred_check_branch
          %664 = sbr.rel (%p662) target = $region56
        $region55: #{tpu_custom_call.1} parent=51 // pred_region
          %s665 = sand.u32 %s165, 1
          %s666 = scalar_lea.sflag [#allocation3], %s665
          %s667 = sand.u32 %s165, 1
          %s668 = smul.addr %s667, 16
          %s669 = scalar_lea.vmem [#allocation2], %s668
          %670 = dma.done %s666, 256
        $region56: #{tpu_custom_call.1} parent=51 // pred_fallthru
          _
      $region52: #{tpu_custom_call.1} parent=5 // pred_fallthru
        _
    $region6: #{tpu_custom_call.1} parent=1 // loop_footer
      %s19 = sadd.s32 1, %s15
    $region7: #{tpu_custom_call.1} parent=1 // loop_footer_branch
      %14 = sbr.rel target = $region3
    $region8: #{tpu_custom_call.1} parent=1 // loop_exit
      _
    %671 = vsyncpa [#allocation3], 1
    %s672 = scalar_lea.sflag [#allocation3], 1
    %673 = vsyncpa %s672, 1

</llo_original>
